<compile_context>
chip_gen: v6e
topology: v6e:2x2x1
jax: 0.10.0
libtpu: 0.0.40
codegen_flags: <defaults>
</compile_context>

<pallas_src>
import jax
import jax.numpy as jnp
from jax.experimental import pallas as pl
from jax.experimental.pallas import tpu as pltpu


def _round_up(x, m):
    return ((x + m - 1) // m) * m


def _generator_kernel(x_ref, w_ref, b_ref, o_ref):
    # x_ref: (tm, D), w_ref: (D, tn), b_ref: (1, tn) f32, o_ref: (tm, tn)
    acc = jnp.dot(x_ref[...], w_ref[...], preferred_element_type=jnp.float32)
    o_ref[...] = (acc + b_ref[...]).astype(o_ref.dtype)


def generator_forward(x, weight_t, bias, *, compute_dtype=None,
                      max_tm=256, max_tn=1024):
    """Generator projection: x @ weight_t + bias.

    x:        (B, S, d_model)
    weight_t: (d_model, vocab)  -- PyTorch nn.Linear weight transposed (W.T)
    bias:     (vocab,)
    compute_dtype: optional dtype (e.g. jnp.bfloat16) to feed the MXU;
                   accumulation and bias add stay in f32, output is x.dtype.
    """
    B, S, D = x.shape
    V = weight_t.shape[1]
    M = B * S
    out_dtype = x.dtype

    if compute_dtype is not None:
        x = x.astype(compute_dtype)
        weight_t = weight_t.astype(compute_dtype)
    bias_f32 = bias.astype(jnp.float32)

    # Tile sizes: multiples of (8, 128); capped so 2x double-buffered blocks fit
    # comfortably inside v7x's 64 MiB physical / 32 MiB default-scoped VMEM even
    # at d_model ~ 1024 (f32: 2*(tm*D + D*tn + tm*tn + tn)*4 ~= 13 MB).
    tm = min(max_tm, _round_up(M, 8))
    tn = min(max_tn, _round_up(V, 128))

    Mp = _round_up(M, tm)
    Vp = _round_up(V, tn)

    x2d = x.reshape(M, D)
    if Mp != M:
        x2d = jnp.pad(x2d, ((0, Mp - M), (0, 0)))
    w = weight_t
    b2d = bias_f32.reshape(1, V)
    if Vp != V:
        w = jnp.pad(w, ((0, 0), (0, Vp - V)))
        b2d = jnp.pad(b2d, ((0, 0), (0, Vp - V)))

    grid = (Mp // tm, Vp // tn)  # M-tiles leading so rows split across cores

    in_bytes = jnp.dtype(x2d.dtype).itemsize
    out_bytes = jnp.dtype(out_dtype).itemsize
    # 2-deep buffering of every operand tile + output tile, with 2x headroom,
    # clamped to stay safe on v7x (64 MiB physical VMEM).
    vmem_need = 2 * (tm * D * in_bytes + D * tn * in_bytes
                     + tn * 4 + tm * tn * out_bytes)
    vmem_limit = int(min(max(2 * vmem_need, 16 << 20), 48 << 20))

    cost = pl.CostEstimate(
        flops=2 * Mp * D * Vp,
        transcendentals=0,
        bytes_accessed=in_bytes * (Mp * D + D * Vp) + 4 * Vp + out_bytes * Mp * Vp,
    )

    out2d = pl.pallas_call(
        _generator_kernel,
        out_shape=jax.ShapeDtypeStruct((Mp, Vp), out_dtype),
        grid_spec=pltpu.PrefetchScalarGridSpec(
            num_scalar_prefetch=0,
            grid=grid,
            in_specs=[
                # D (<= ~1024) stays un-tiled: full-K blocks, no reduction axis.
                pl.BlockSpec((tm, D), lambda i, j: (i, 0)),
                # TODO(synk): for the small-M decode regime consider
                # pipeline_mode=pl.Buffered(3) on this weight spec to deepen
                # the weight-streaming pipeline.
                pl.BlockSpec((D, tn), lambda i, j: (0, j)),
                pl.BlockSpec((1, tn), lambda i, j: (0, j)),
            ],
            out_specs=pl.BlockSpec((tm, tn), lambda i, j: (i, j)),
        ),
        compiler_params=pltpu.CompilerParams(
            dimension_semantics=("parallel", "parallel"),
            vmem_limit_bytes=vmem_limit,
        ),
        cost_estimate=cost,
    )(x2d, w, b2d)

    out2d = out2d[:M, :V]
    return out2d.reshape(B, S, V)


if __name__ == "__main__":
    key = jax.random.PRNGKey(0)

    # --- Test 1: small shapes consistent with the module (f32, tight check) ---
    B, S, D, V = 2, 8, 32, 128
    kx, kw, kb = jax.random.split(key, 3)
    x = jax.random.normal(kx, (B, S, D), dtype=jnp.float32)
    weight = jax.random.normal(kw, (V, D), dtype=jnp.float32) * 0.02  # PyTorch (V, D)
    bias = jax.random.normal(kb, (V,), dtype=jnp.float32) * 0.02
    weight_t = weight.T  # (D, V)

    out = generator_forward(x, weight_t, bias)
    out = jax.block_until_ready(out)
    ref = x @ weight.T + bias
    assert out.shape == (B, S, V)
    assert jnp.allclose(out, ref, atol=1e-5, rtol=1e-5)

    # --- Test 2: exercises multi-tile grid + M/V tail padding + bf16 MXU path ---
    B2, S2, D2, V2 = 3, 100, 64, 2176  # M=300 -> 2 M-tiles; V -> 3 V-tiles (padded)
    k2 = jax.random.PRNGKey(1)
    kx2, kw2, kb2 = jax.random.split(k2, 3)
    x2 = jax.random.normal(kx2, (B2, S2, D2), dtype=jnp.float32)
    weight2 = jax.random.normal(kw2, (V2, D2), dtype=jnp.float32) * 0.02
    bias2 = jax.random.normal(kb2, (V2,), dtype=jnp.float32) * 0.02

    out2 = generator_forward(x2, weight2.T, bias2, compute_dtype=jnp.bfloat16)
    out2 = jax.block_until_ready(out2)
    ref2 = x2 @ weight2.T + bias2
    assert out2.shape == (B2, S2, V2)
    assert jnp.allclose(out2, ref2, atol=3e-2, rtol=3e-2)  # bf16 operands

    print("KERNEL_OK")
</pallas_src>

<mosaic_0001>
module attributes {stable_mosaic.version = 11 : i64} {
  func.func @_generator_kernel(%arg0: i32, %arg1: i32, %arg2: memref<16x32xf32, #tpu.memory_space<vmem>>, %arg3: memref<32x128xf32, #tpu.memory_space<vmem>>, %arg4: memref<1x128xf32, #tpu.memory_space<vmem>>, %arg5: memref<16x128xf32, #tpu.memory_space<vmem>>) attributes {dimension_semantics = [#tpu.dimension_semantics<parallel>, #tpu.dimension_semantics<parallel>], iteration_bounds = array<i64: 1, 1>, scalar_prefetch = 0 : i64, scratch_operands = 0 : i64, tpu.core_type = #tpu.core_type<tc>, window_params = [{transform_indices = @transform_0, window_bounds = array<i64: 16, 32>}, {transform_indices = @transform_1, window_bounds = array<i64: 32, 128>}, {transform_indices = @transform_2, window_bounds = array<i64: 1, 128>}, {transform_indices = @transform_3, window_bounds = array<i64: 16, 128>}]} {
    %c0 = arith.constant 0 : index
    %c0_0 = arith.constant 0 : index
    %0 = vector.load %arg2[%c0, %c0_0] : memref<16x32xf32, #tpu.memory_space<vmem>>, vector<16x32xf32>
    %c0_1 = arith.constant 0 : index
    %c0_2 = arith.constant 0 : index
    %1 = vector.load %arg3[%c0_1, %c0_2] : memref<32x128xf32, #tpu.memory_space<vmem>>, vector<32x128xf32>
    %cst = arith.constant dense<0.000000e+00> : vector<16x128xf32>
    %2 = tpu.matmul %0, %1, %cst {dimension_numbers = #tpu.dot_dimension_numbers<[1], [0], [0], [1], [0, 0, 1, 1], [], []>} : vector<16x32xf32>, vector<32x128xf32>, vector<16x128xf32> -> vector<16x128xf32>
    %c0_3 = arith.constant 0 : index
    %c0_4 = arith.constant 0 : index
    %3 = vector.load %arg4[%c0_3, %c0_4] : memref<1x128xf32, #tpu.memory_space<vmem>>, vector<1x128xf32>
    %4 = vector.broadcast %3 : vector<1x128xf32> to vector<16x128xf32>
    %5 = arith.addf %2, %4 : vector<16x128xf32>
    %c0_5 = arith.constant 0 : index
    %c0_6 = arith.constant 0 : index
    %6 = vector.load %arg5[%c0_5, %c0_6] : memref<16x128xf32, #tpu.memory_space<vmem>>, vector<16x128xf32>
    tpu.vector_store %arg5[%c0_5, %c0_6], %5 {strides = array<i32>} : memref<16x128xf32, #tpu.memory_space<vmem>>, vector<16x128xf32>,
    return
  }
  func.func @transform_0(%arg0: i32, %arg1: i32) -> (i32, i32) {
    %c0_i32 = arith.constant 0 : i32
    %c0_i32_0 = arith.constant 0 : i32
    return %arg0, %c0_i32 : i32, i32
  }
  func.func @transform_1(%arg0: i32, %arg1: i32) -> (i32, i32) {
    %c0_i32 = arith.constant 0 : i32
    %c0_i32_0 = arith.constant 0 : i32
    return %c0_i32, %arg1 : i32, i32
  }
  func.func @transform_2(%arg0: i32, %arg1: i32) -> (i32, i32) {
    %c0_i32 = arith.constant 0 : i32
    %c0_i32_0 = arith.constant 0 : i32
    return %c0_i32, %arg1 : i32, i32
  }
  func.func @transform_3(%arg0: i32, %arg1: i32) -> (i32, i32) {
    %c0_i32 = arith.constant 0 : i32
    return %arg0, %arg1 : i32, i32
  }
}

</mosaic_0001>

<llo_original>
// kernel: tpu_custom_call.1
$region0: #{tpu_custom_call.1}
  #allocation0 [shape = 'u32[]', space=smem, size = 0x4, offset = 0x4, fixed_abs, tag = 'smem constant byte address 0x4 - core index']
  #allocation1 [shape = 'u32[144,128]{1,0:T(1,128)}', space=vmem, size = 0x12000, scoped, tag = 'internal scratch']
  %s0 = inlined_call_operand.hbm [shape: f32[16,32], index: 0, kind: input, shape index: {}]
  %s1 = inlined_call_operand.hbm [shape: f32[32,128], index: 1, kind: input, shape index: {}]
  %s2 = inlined_call_operand.vmem [shape: f32[1,128], index: 2, kind: input, shape index: {}]
  %s3 = inlined_call_operand.hbm [shape: f32[16,128], index: 3, kind: output, shape index: {}]
  %s4 = sld [smem:[#allocation0]]
  $region30: #{tpu_custom_call.1} parent=0
    _
  %s6 = ssub.s32 1, %s4
  %s7 = scalar_select 0, %s6, %s4
  $region1: #{tpu_custom_call.1} parent=0
    #allocation2 [shape = 'u8[8192]{0}', space=vmem, size = 0x2000, scoped, tag = 'input window, operand 0, single buffered']
    #allocation3 [shape = 's32[1]{0}', space=sflag, size = 0x4, scoped, tag = 'scoped memory for tpu_custom_call.1']
    #allocation4 [shape = 's32[1]{0}', space=sflag, size = 0x4, scoped, tag = 'scoped memory for tpu_custom_call.1']
    #allocation5 [shape = 'u8[16384]{0}', space=vmem, size = 0x4000, scoped, tag = 'input window, operand 1, single buffered']
    #allocation6 [shape = 's32[1]{0}', space=sflag, size = 0x4, scoped, tag = 'scoped memory for tpu_custom_call.1']
    #allocation7 [shape = 'u8[8192]{0}', space=vmem, size = 0x2000, scoped, tag = 'output window, operand 0, single buffered']
    %8 = vsyncpa [#allocation3], 0
    %9 = vsyncpa [#allocation6], 0
    %10 = vsyncpa [#allocation4], 0
    // Predicated region
    $region2: #{tpu_custom_call.1} parent=1 // pred_check
      _
    $region3: #{tpu_custom_call.1} parent=1 // pred_check_branch
      %12 = sbr.rel (0) target = $region5
    $region4: #{tpu_custom_call.1} parent=1 // pred_region
      %s14 = ssub.s32 256, 256
      %15 = vsyncadd [#allocation3], %s14
      %s16 = sshll.u32 [#allocation2], 4
      %s17 = int_to_ptr.vmem [resolvable:$true] %s16
      %22 = dma.hbm_to_vmem [thread:$0]  %s0, 256, %s17, [#allocation3], 128, 128, 8
    $region5: #{tpu_custom_call.1} parent=1 // pred_fallthru
      _
    // Predicated region
    $region6: #{tpu_custom_call.1} parent=1 // pred_check
      _
    $region7: #{tpu_custom_call.1} parent=1 // pred_check_branch
      %24 = sbr.rel (0) target = $region9
    $region8: #{tpu_custom_call.1} parent=1 // pred_region
      %s26 = ssub.s32 512, 512
      %27 = vsyncadd [#allocation6], %s26
      %s28 = sshll.u32 [#allocation5], 4
      %s29 = int_to_ptr.vmem [resolvable:$true] %s28
      %34 = dma.hbm_to_vmem [thread:$0]  %s1, 512, %s29, [#allocation6], 128, 128, 8
    $region9: #{tpu_custom_call.1} parent=1 // pred_fallthru
      _
    // Predicated region
    $region10: #{tpu_custom_call.1} parent=1 // pred_check
      _
    $region11: #{tpu_custom_call.1} parent=1 // pred_check_branch
      %36 = sbr.rel (0) target = $region13
    $region12: #{tpu_custom_call.1} parent=1 // pred_region
      _
    $region13: #{tpu_custom_call.1} parent=1 // pred_fallthru
      _
    // Predicated region
    $region14: #{tpu_custom_call.1} parent=1 // pred_check
      _
    $region15: #{tpu_custom_call.1} parent=1 // pred_check_branch
      %38 = sbr.rel (0) target = $region17
    $region16: #{tpu_custom_call.1} parent=1 // pred_region
      %39 = dma.done [#allocation3], 256
    $region17: #{tpu_custom_call.1} parent=1 // pred_fallthru
      _
    // Predicated region
    $region18: #{tpu_custom_call.1} parent=1 // pred_check
      _
    $region19: #{tpu_custom_call.1} parent=1 // pred_check_branch
      %41 = sbr.rel (0) target = $region21
    $region20: #{tpu_custom_call.1} parent=1 // pred_region
      %42 = dma.done [#allocation6], 512
    $region21: #{tpu_custom_call.1} parent=1 // pred_fallthru
      _
    %v43 = vld [vmem:[#allocation2] sm:$0xff]
    %v44 = vld [vmem:[#allocation2 + $0x8] sm:$0xff]
    %v45 = vld [vmem:[#allocation5] sm:$0xff]
    %v46 = vld [vmem:[#allocation5 + $0x8] sm:$0xff]
    %v47 = vld [vmem:[#allocation5 + $0x10] sm:$0xff]
    %v48 = vld [vmem:[#allocation5 + $0x18] sm:$0xff]
    %v49 = vld [vmem:[%s2] sm:$0x1]
    %v51 = vlaneseq
    %v52 = vshrl.u32 %v51, 7
    %v53 = vsub.s32 0, %v52
    %v54 = vrot.slane %v49, %v53
    %vm56 = vcmask 261120
    %v58 = vsel %vm56, %v43, 0
    %v61 = vsel %vm56, %v44, 0
    %63 = vmatprep.subr.mxu0 0.0
    %64 = vmatpush1.msra.mxu0 0.0
    %65 = vmatprep.subr.mxu0 0.0
    %66 = vmatpush1.msra.mxu0 0.0
    %67 = vmatprep.subr.mxu0 0.0
    %68 = vmatpush1.msra.mxu0 0.0
    %69 = vmatprep.subr.mxu0 0.0
    %70 = vmatpush1.msra.mxu0 0.0
    %71 = vmatprep.subr.mxu0 0.0
    %72 = vmatpush1.msra.mxu0 0.0
    %73 = vmatprep.subr.mxu0 0.0
    %74 = vmatpush1.msra.mxu0 0.0
    %75 = vmatprep.subr.mxu0 0.0
    %76 = vmatpush1.msra.mxu0 0.0
    %77 = vmatprep.subr.mxu0 0.0
    %78 = vmatpush1.msra.mxu0 0.0
    %79 = vmatprep.subr.mxu0 0.0
    %80 = vmatpush1.msra.mxu0 0.0
    %81 = vmatprep.subr.mxu0 0.0
    %82 = vmatpush1.msra.mxu0 0.0
    %83 = vmatprep.subr.mxu0 0.0
    %84 = vmatpush1.msra.mxu0 0.0
    %85 = vmatprep.subr.mxu0 0.0
    %86 = vmatpush1.msra.mxu0 0.0
    %87 = vmatprep.subr.mxu0 0.0
    %88 = vmatpush1.msra.mxu0 %v48
    %89 = vmatprep.subr.mxu0 0.0
    %90 = vmatpush1.msra.mxu0 %v47
    %91 = vmatprep.subr.mxu0 0.0
    %92 = vmatpush1.msra.mxu0 %v46
    %93 = vmatprep.subr.mxu0 0.0
    %94 = vmatpush1.msra.mxu0 %v45
    %95 = vmatprep.subr.mxu0 0.0
    %96 = vmatpush2.msra.mxu0 0.0
    %97 = vmatprep.subr.mxu0 0.0
    %98 = vmatpush2.msra.mxu0 0.0
    %99 = vmatprep.subr.mxu0 0.0
    %100 = vmatpush2.msra.mxu0 0.0
    %101 = vmatprep.subr.mxu0 0.0
    %102 = vmatpush2.msra.mxu0 0.0
    %103 = vmatprep.subr.mxu0 0.0
    %104 = vmatpush2.msra.mxu0 0.0
    %105 = vmatprep.subr.mxu0 0.0
    %106 = vmatpush2.msra.mxu0 0.0
    %107 = vmatprep.subr.mxu0 0.0
    %108 = vmatpush2.msra.mxu0 0.0
    %109 = vmatprep.subr.mxu0 0.0
    %110 = vmatpush2.msra.mxu0 0.0
    %111 = vmatprep.subr.mxu0 0.0
    %112 = vmatpush2.msra.mxu0 0.0
    %113 = vmatprep.subr.mxu0 0.0
    %114 = vmatpush2.msra.mxu0 0.0
    %115 = vmatprep.subr.mxu0 0.0
    %116 = vmatpush2.msra.mxu0 0.0
    %117 = vmatprep.subr.mxu0 0.0
    %118 = vmatpush2.msra.mxu0 0.0
    %119 = vmatprep.subr.mxu0 0.0
    %120 = vmatpush2.msra.mxu0 0.0
    %121 = vmatprep.subr.mxu0 0.0
    %122 = vmatpush2.msra.mxu0 0.0
    %123 = vmatprep.subr.mxu0 0.0
    %124 = vmatpush2.msra.mxu0 0.0
    %125 = vmatprep.subr.mxu0 0.0
    %126 = vmatpush2.msra.mxu0 0.0
    %127 = vmatprep.mubr.f32.mxu0 0.0
    %128 = vmatmul.mubr.f32.gmra.mxu0 %v58
    %v129 = vpop.f32.mrf.mxu0
    %v130 = vadd.f32 %v54, %v129
    %v131 = vpop.f32.mrf.mxu0
    %132 = vmatprep.mubr.f32.mxu0 0.0
    %133 = vmatmul.mubr.f32.gmra.mxu0 %v61
    %v134 = vpop.f32.mrf.mxu0
    %v135 = vadd.f32 %v54, %v134
    %v136 = vpop.f32.mrf.mxu0
    %137 = vdwg.mxu0
    %138 = vst [vmem:[#allocation7] sm:$0xff] %v130
    %139 = vst [vmem:[#allocation7 + $0x8] sm:$0xff] %v135
    // Predicated region
    $region22: #{tpu_custom_call.1} parent=1 // pred_check
      _
    $region23: #{tpu_custom_call.1} parent=1 // pred_check_branch
      %141 = sbr.rel (0) target = $region25
    $region24: #{tpu_custom_call.1} parent=1 // pred_region
      %s143 = ssub.s32 256, 256
      %144 = vsyncadd [#allocation4], %s143
      %s145 = sshll.u32 [#allocation7], 4
      %s146 = int_to_ptr.vmem [resolvable:$true] %s145
      %151 = dma.vmem_to_hbm [thread:$0]  %s146, 256, %s3, [#allocation4], 128, 128, 8
    $region25: #{tpu_custom_call.1} parent=1 // pred_fallthru
      _
    // Predicated region
    $region26: #{tpu_custom_call.1} parent=1 // pred_check
      _
    $region27: #{tpu_custom_call.1} parent=1 // pred_check_branch
      %153 = sbr.rel (0) target = $region29
    $region28: #{tpu_custom_call.1} parent=1 // pred_region
      %154 = dma.done [#allocation4], 256
    $region29: #{tpu_custom_call.1} parent=1 // pred_fallthru
      _
    %155 = vsyncpa [#allocation3], 1
    %156 = vsyncpa [#allocation6], 1
    %157 = vsyncpa [#allocation4], 1

</llo_original>
